<compile_context>
chip_gen: v6e
topology: v6e:2x2x1
jax: 0.10.0
libtpu: 0.0.40
codegen_flags: <defaults>
</compile_context>

<pallas_src>
import jax
import jax.numpy as jnp
from jax.experimental import pallas as pl
from jax.experimental.pallas import tpu as pltpu


def rnn_kernel(x_ref,        # (S, B, IN)   time-major input
               w_ih0_ref,    # (IN, H)      W_ih_l0^T
               b0_ref,       # (1, H)       b_ih_l0 + b_hh_l0
               w_skew_ref,   # (2H, 2H)     [[W_hh0^T, W_ih1^T], [0, W_hh1^T]]
               b1_ref,       # (1, H)       b_ih_l1 + b_hh_l1
               w_fc_ref,     # (2H, OUT)    [0 ; W_fc^T]  (h0 half zeroed)
               b_fc_ref,     # (1, OUT)
               out_ref,      # (B*S, OUT)   batch-major, matches torch view(-1, H) @ fc
               hid_ref):     # (2, B, H)    final hidden state per layer
    S, B, IN = x_ref.shape
    H = b1_ref.shape[1]
    H2 = 2 * H

    # --- Hoisted layer-0 input projection (no recurrent dependence). ----------
    x_flat = x_ref[...].reshape(S * B, IN)
    xp = (jnp.dot(x_flat, w_ih0_ref[...], preferred_element_type=jnp.float32)
          + b0_ref[...]).reshape(S, B, H)                      # (S, B, H)

    # --- Precompute additive terms for the skewed recurrence (off the chain). --
    #   add[k-1] = [ x_proj[k]  (zeros when k == S) , b1 ]     shape (B, 2H)
    xp_next = jnp.concatenate(
        [xp[1:], jnp.zeros((1, B, H), jnp.float32)], axis=0)   # (S, B, H)
    b1_b = jnp.broadcast_to(b1_ref[...], (S, B, H))
    add = jnp.concatenate([xp_next, b1_b], axis=-1)            # (S, B, 2H)

    w_skew = w_skew_ref[...]                                   # loop-invariant MXU RHS

    # --- Skewed recurrence: one fused matmul + one tanh per step. -------------
    h0 = jnp.tanh(xp[0])                                       # h0_0
    s = jnp.concatenate([h0, jnp.zeros((B, H), jnp.float32)], axis=-1)  # [h0_0, 0]
    h0_final = h0                                              # correct when S == 1

    packed = []
    for k in range(1, S + 1):                                  # fully unrolled, S static
        s = jnp.tanh(jnp.dot(s, w_skew, preferred_element_type=jnp.float32)
                     + add[k - 1])                             # [h0_k, h1_{k-1}]
        packed.append(s)
        if k == S - 1:
            h0_final = s[:, :H]                                # h0_{S-1}

    hid_ref[0] = h0_final
    hid_ref[1] = s[:, H:]                                      # h1_{S-1}

    # --- Deferred FC head: one matmul over the whole sequence, one store. -----
    # Batch-major slab (rows ordered (b, t)); FC weight's h0-half rows are zero,
    # so the junk h0_S in the last packed state and every h0 half are ignored.
    slab = jnp.stack(packed, axis=1).reshape(B * S, H2)        # (B*S, 2H)
    out_ref[...] = (jnp.dot(slab, w_fc_ref[...], preferred_element_type=jnp.float32)
                    + b_fc_ref[...]).astype(out_ref.dtype)


@jax.jit
def rnn_forward(x, params):
    """x: (B, S, IN) float32. Returns (out (B*S, OUT), hidden (2, B, H))."""
    B, S, IN = x.shape
    H = params["w_hh0"].shape[0]
    OUT = params["w_fc"].shape[0]

    # Wrapper glue: time-major input, skew-fused weights, fused/padded biases.
    x_t = jnp.transpose(x, (1, 0, 2))                                   # (S, B, IN)
    w_ih0_t = params["w_ih0"].T                                         # (IN, H)
    b0 = (params["b_ih0"] + params["b_hh0"]).reshape(1, H)
    b1 = (params["b_ih1"] + params["b_hh1"]).reshape(1, H)

    # Fused skew weight: [h0, h1_prev] @ W_skew
    #   = [h0 @ W_hh0^T , h0 @ W_ih1^T + h1_prev @ W_hh1^T]
    w_skew = jnp.concatenate(
        [jnp.concatenate([params["w_hh0"].T, params["w_ih1"].T], axis=1),
         jnp.concatenate([jnp.zeros((H, H), jnp.float32), params["w_hh1"].T], axis=1)],
        axis=0)                                                         # (2H, 2H)

    # FC weight padded so the h0 half of the packed state contributes zero.
    w_fc_pad = jnp.concatenate(
        [jnp.zeros((H, OUT), jnp.float32), params["w_fc"].T], axis=0)   # (2H, OUT)
    b_fc = params["b_fc"].reshape(1, OUT)

    vmem = pl.BlockSpec(memory_space=pltpu.MemorySpace.VMEM)
    out, hidden = pl.pallas_call(
        rnn_kernel,
        out_shape=(
            jax.ShapeDtypeStruct((B * S, OUT), jnp.float32),
            jax.ShapeDtypeStruct((2, B, H), jnp.float32),
        ),
        in_specs=[vmem] * 7,
        out_specs=(vmem, vmem),
    )(x_t, w_ih0_t, b0, w_skew, b1, w_fc_pad, b_fc)
    return out, hidden


def _reference(x, params):
    """Pure-JAX reference with identical semantics (sanity check)."""
    B, S, IN = x.shape
    H = params["w_hh0"].shape[0]
    h0 = jnp.zeros((B, H), jnp.float32)
    h1 = jnp.zeros((B, H), jnp.float32)
    outs = []
    for t in range(S):
        xt = x[:, t, :]
        h0 = jnp.tanh(xt @ params["w_ih0"].T + params["b_ih0"]
                      + h0 @ params["w_hh0"].T + params["b_hh0"])
        h1 = jnp.tanh(h0 @ params["w_ih1"].T + params["b_ih1"]
                      + h1 @ params["w_hh1"].T + params["b_hh1"])
        outs.append(h1)
    out = jnp.stack(outs, axis=1).reshape(B * S, H)
    out = out @ params["w_fc"].T + params["b_fc"]
    hidden = jnp.stack([h0, h1], axis=0)
    return out, hidden


def init_params(key, input_size=8, hidden_size=64, output_size=8):
    H, IN, OUT = hidden_size, input_size, output_size
    k = 1.0 / jnp.sqrt(jnp.float32(H))
    names_shapes = [
        ("w_ih0", (H, IN)), ("w_hh0", (H, H)), ("b_ih0", (H,)), ("b_hh0", (H,)),
        ("w_ih1", (H, H)), ("w_hh1", (H, H)), ("b_ih1", (H,)), ("b_hh1", (H,)),
        ("w_fc", (OUT, H)), ("b_fc", (OUT,)),
    ]
    keys = jax.random.split(key, len(names_shapes))
    params = {}
    for (name, shape), kk in zip(names_shapes, keys):
        params[name] = jax.random.uniform(kk, shape, jnp.float32, -k, k)
    return params


if __name__ == "__main__":
    key = jax.random.PRNGKey(0)
    kx, kp = jax.random.split(key)

    B, S, IN, H, OUT = 2, 8, 8, 64, 8
    x = jax.random.normal(kx, (B, S, IN), jnp.float32)
    params = init_params(kp, IN, H, OUT)

    out, hidden = jax.block_until_ready(rnn_forward(x, params))

    out_ref, hidden_ref = _reference(x, params)
    assert out.shape == (B * S, OUT)
    assert hidden.shape == (2, B, H)
    assert jnp.allclose(out, out_ref, atol=1e-5, rtol=1e-5)
    assert jnp.allclose(hidden, hidden_ref, atol=1e-5, rtol=1e-5)

    print("KERNEL_OK")
</pallas_src>

<mosaic_0001>
module attributes {stable_mosaic.version = 11 : i64} {
  func.func @rnn_kernel(%arg0: memref<8x2x8xf32, #tpu.memory_space<vmem>>, %arg1: memref<8x64xf32, #tpu.memory_space<vmem>>, %arg2: memref<1x64xf32, #tpu.memory_space<vmem>>, %arg3: memref<128x128xf32, #tpu.memory_space<vmem>>, %arg4: memref<1x64xf32, #tpu.memory_space<vmem>>, %arg5: memref<128x8xf32, #tpu.memory_space<vmem>>, %arg6: memref<1x8xf32, #tpu.memory_space<vmem>>, %arg7: memref<16x8xf32, #tpu.memory_space<vmem>>, %arg8: memref<2x2x64xf32, #tpu.memory_space<vmem>>) attributes {dimension_semantics = [], scalar_prefetch = 0 : i64, scratch_operands = 0 : i64, tpu.core_type = #tpu.core_type<tc>} {
    %c0 = arith.constant 0 : index
    %c0_0 = arith.constant 0 : index
    %c0_1 = arith.constant 0 : index
    %0 = vector.load %arg0[%c0, %c0_0, %c0_1] : memref<8x2x8xf32, #tpu.memory_space<vmem>>, vector<8x2x8xf32>
    %1 = vector.shape_cast %0 : vector<8x2x8xf32> to vector<16x8xf32>
    %c0_2 = arith.constant 0 : index
    %c0_3 = arith.constant 0 : index
    %2 = vector.load %arg1[%c0_2, %c0_3] : memref<8x64xf32, #tpu.memory_space<vmem>>, vector<8x64xf32>
    %cst = arith.constant dense<0.000000e+00> : vector<16x64xf32>
    %3 = tpu.matmul %1, %2, %cst {dimension_numbers = #tpu.dot_dimension_numbers<[1], [0], [0], [1], [0, 0, 1, 1], [], []>} : vector<16x8xf32>, vector<8x64xf32>, vector<16x64xf32> -> vector<16x64xf32>
    %c0_4 = arith.constant 0 : index
    %c0_5 = arith.constant 0 : index
    %4 = vector.load %arg2[%c0_4, %c0_5] : memref<1x64xf32, #tpu.memory_space<vmem>>, vector<1x64xf32>
    %5 = vector.broadcast %4 : vector<1x64xf32> to vector<16x64xf32>
    %6 = arith.addf %3, %5 : vector<16x64xf32>
    %7 = vector.shape_cast %6 : vector<16x64xf32> to vector<8x2x64xf32>
    %8 = vector.extract_strided_slice %7 {offsets = [1, 0, 0], sizes = [7, 2, 64], strides = [1, 1, 1]} : vector<8x2x64xf32> to vector<7x2x64xf32>
    %cst_6 = arith.constant 0.000000e+00 : f32
    %9 = vector.broadcast %cst_6 : f32 to vector<1x2x64xf32>
    %10 = tpu.concatenate %8, %9 in 0 : vector<7x2x64xf32>, vector<1x2x64xf32> -> vector<8x2x64xf32>
    %c0_7 = arith.constant 0 : index
    %c0_8 = arith.constant 0 : index
    %11 = vector.load %arg4[%c0_7, %c0_8] : memref<1x64xf32, #tpu.memory_space<vmem>>, vector<1x64xf32>
    %12 = vector.shape_cast %11 : vector<1x64xf32> to vector<1x1x64xf32>
    %13 = vector.broadcast %12 : vector<1x1x64xf32> to vector<8x2x64xf32>
    %14 = tpu.concatenate %10, %13 in 2 : vector<8x2x64xf32>, vector<8x2x64xf32> -> vector<8x2x128xf32>
    %c0_9 = arith.constant 0 : index
    %c0_10 = arith.constant 0 : index
    %15 = vector.load %arg3[%c0_9, %c0_10] : memref<128x128xf32, #tpu.memory_space<vmem>>, vector<128x128xf32>
    %16 = vector.extract_strided_slice %7 {offsets = [0, 0, 0], sizes = [1, 2, 64], strides = [1, 1, 1]} : vector<8x2x64xf32> to vector<1x2x64xf32>
    %17 = vector.shape_cast %16 : vector<1x2x64xf32> to vector<2x64xf32>
    %18 = math.tanh %17 : vector<2x64xf32>
    %cst_11 = arith.constant 0.000000e+00 : f32
    %19 = vector.broadcast %cst_11 : f32 to vector<2x64xf32>
    %20 = tpu.concatenate %18, %19 in 1 : vector<2x64xf32>, vector<2x64xf32> -> vector<2x128xf32>
    %cst_12 = arith.constant dense<0.000000e+00> : vector<2x128xf32>
    %21 = tpu.matmul %20, %15, %cst_12 {dimension_numbers = #tpu.dot_dimension_numbers<[1], [0], [0], [1], [0, 0, 1, 1], [], []>} : vector<2x128xf32>, vector<128x128xf32>, vector<2x128xf32> -> vector<2x128xf32>
    %22 = vector.extract_strided_slice %14 {offsets = [0, 0, 0], sizes = [1, 2, 128], strides = [1, 1, 1]} : vector<8x2x128xf32> to vector<1x2x128xf32>
    %23 = vector.shape_cast %22 : vector<1x2x128xf32> to vector<2x128xf32>
    %24 = arith.addf %21, %23 : vector<2x128xf32>
    %25 = math.tanh %24 : vector<2x128xf32>
    %cst_13 = arith.constant dense<0.000000e+00> : vector<2x128xf32>
    %26 = tpu.matmul %25, %15, %cst_13 {dimension_numbers = #tpu.dot_dimension_numbers<[1], [0], [0], [1], [0, 0, 1, 1], [], []>} : vector<2x128xf32>, vector<128x128xf32>, vector<2x128xf32> -> vector<2x128xf32>
    %27 = vector.extract_strided_slice %14 {offsets = [1, 0, 0], sizes = [1, 2, 128], strides = [1, 1, 1]} : vector<8x2x128xf32> to vector<1x2x128xf32>
    %28 = vector.shape_cast %27 : vector<1x2x128xf32> to vector<2x128xf32>
    %29 = arith.addf %26, %28 : vector<2x128xf32>
    %30 = math.tanh %29 : vector<2x128xf32>
    %cst_14 = arith.constant dense<0.000000e+00> : vector<2x128xf32>
    %31 = tpu.matmul %30, %15, %cst_14 {dimension_numbers = #tpu.dot_dimension_numbers<[1], [0], [0], [1], [0, 0, 1, 1], [], []>} : vector<2x128xf32>, vector<128x128xf32>, vector<2x128xf32> -> vector<2x128xf32>
    %32 = vector.extract_strided_slice %14 {offsets = [2, 0, 0], sizes = [1, 2, 128], strides = [1, 1, 1]} : vector<8x2x128xf32> to vector<1x2x128xf32>
    %33 = vector.shape_cast %32 : vector<1x2x128xf32> to vector<2x128xf32>
    %34 = arith.addf %31, %33 : vector<2x128xf32>
    %35 = math.tanh %34 : vector<2x128xf32>
    %cst_15 = arith.constant dense<0.000000e+00> : vector<2x128xf32>
    %36 = tpu.matmul %35, %15, %cst_15 {dimension_numbers = #tpu.dot_dimension_numbers<[1], [0], [0], [1], [0, 0, 1, 1], [], []>} : vector<2x128xf32>, vector<128x128xf32>, vector<2x128xf32> -> vector<2x128xf32>
    %37 = vector.extract_strided_slice %14 {offsets = [3, 0, 0], sizes = [1, 2, 128], strides = [1, 1, 1]} : vector<8x2x128xf32> to vector<1x2x128xf32>
    %38 = vector.shape_cast %37 : vector<1x2x128xf32> to vector<2x128xf32>
    %39 = arith.addf %36, %38 : vector<2x128xf32>
    %40 = math.tanh %39 : vector<2x128xf32>
    %cst_16 = arith.constant dense<0.000000e+00> : vector<2x128xf32>
    %41 = tpu.matmul %40, %15, %cst_16 {dimension_numbers = #tpu.dot_dimension_numbers<[1], [0], [0], [1], [0, 0, 1, 1], [], []>} : vector<2x128xf32>, vector<128x128xf32>, vector<2x128xf32> -> vector<2x128xf32>
    %42 = vector.extract_strided_slice %14 {offsets = [4, 0, 0], sizes = [1, 2, 128], strides = [1, 1, 1]} : vector<8x2x128xf32> to vector<1x2x128xf32>
    %43 = vector.shape_cast %42 : vector<1x2x128xf32> to vector<2x128xf32>
    %44 = arith.addf %41, %43 : vector<2x128xf32>
    %45 = math.tanh %44 : vector<2x128xf32>
    %cst_17 = arith.constant dense<0.000000e+00> : vector<2x128xf32>
    %46 = tpu.matmul %45, %15, %cst_17 {dimension_numbers = #tpu.dot_dimension_numbers<[1], [0], [0], [1], [0, 0, 1, 1], [], []>} : vector<2x128xf32>, vector<128x128xf32>, vector<2x128xf32> -> vector<2x128xf32>
    %47 = vector.extract_strided_slice %14 {offsets = [5, 0, 0], sizes = [1, 2, 128], strides = [1, 1, 1]} : vector<8x2x128xf32> to vector<1x2x128xf32>
    %48 = vector.shape_cast %47 : vector<1x2x128xf32> to vector<2x128xf32>
    %49 = arith.addf %46, %48 : vector<2x128xf32>
    %50 = math.tanh %49 : vector<2x128xf32>
    %cst_18 = arith.constant dense<0.000000e+00> : vector<2x128xf32>
    %51 = tpu.matmul %50, %15, %cst_18 {dimension_numbers = #tpu.dot_dimension_numbers<[1], [0], [0], [1], [0, 0, 1, 1], [], []>} : vector<2x128xf32>, vector<128x128xf32>, vector<2x128xf32> -> vector<2x128xf32>
    %52 = vector.extract_strided_slice %14 {offsets = [6, 0, 0], sizes = [1, 2, 128], strides = [1, 1, 1]} : vector<8x2x128xf32> to vector<1x2x128xf32>
    %53 = vector.shape_cast %52 : vector<1x2x128xf32> to vector<2x128xf32>
    %54 = arith.addf %51, %53 : vector<2x128xf32>
    %55 = math.tanh %54 : vector<2x128xf32>
    %56 = vector.extract_strided_slice %55 {offsets = [0, 0], sizes = [2, 64], strides = [1, 1]} : vector<2x128xf32> to vector<2x64xf32>
    %cst_19 = arith.constant dense<0.000000e+00> : vector<2x128xf32>
    %57 = tpu.matmul %55, %15, %cst_19 {dimension_numbers = #tpu.dot_dimension_numbers<[1], [0], [0], [1], [0, 0, 1, 1], [], []>} : vector<2x128xf32>, vector<128x128xf32>, vector<2x128xf32> -> vector<2x128xf32>
    %58 = vector.extract_strided_slice %14 {offsets = [7, 0, 0], sizes = [1, 2, 128], strides = [1, 1, 1]} : vector<8x2x128xf32> to vector<1x2x128xf32>
    %59 = vector.shape_cast %58 : vector<1x2x128xf32> to vector<2x128xf32>
    %60 = arith.addf %57, %59 : vector<2x128xf32>
    %61 = math.tanh %60 : vector<2x128xf32>
    %c0_20 = arith.constant 0 : index
    %c0_21 = arith.constant 0 : index
    %c0_22 = arith.constant 0 : index
    %62 = vector.load %arg8[%c0_20, %c0_21, %c0_22] : memref<2x2x64xf32, #tpu.memory_space<vmem>>, vector<1x2x64xf32>
    %63 = vector.shape_cast %62 : vector<1x2x64xf32> to vector<2x64xf32>
    %64 = vector.shape_cast %56 : vector<2x64xf32> to vector<1x2x64xf32>
    tpu.vector_store %arg8[%c0_20, %c0_21, %c0_22], %64 {strides = array<i32>} : memref<2x2x64xf32, #tpu.memory_space<vmem>>, vector<1x2x64xf32>,
    %65 = vector.extract_strided_slice %61 {offsets = [0, 64], sizes = [2, 64], strides = [1, 1]} : vector<2x128xf32> to vector<2x64xf32>
    %c1 = arith.constant 1 : index
    %c0_23 = arith.constant 0 : index
    %c0_24 = arith.constant 0 : index
    %66 = vector.load %arg8[%c1, %c0_23, %c0_24] : memref<2x2x64xf32, #tpu.memory_space<vmem>>, vector<1x2x64xf32>
    %67 = vector.shape_cast %66 : vector<1x2x64xf32> to vector<2x64xf32>
    %68 = vector.shape_cast %65 : vector<2x64xf32> to vector<1x2x64xf32>
    tpu.vector_store %arg8[%c1, %c0_23, %c0_24], %68 {strides = array<i32>} : memref<2x2x64xf32, #tpu.memory_space<vmem>>, vector<1x2x64xf32>,
    %69 = vector.shape_cast %25 : vector<2x128xf32> to vector<2x1x128xf32>
    %70 = vector.shape_cast %30 : vector<2x128xf32> to vector<2x1x128xf32>
    %71 = vector.shape_cast %35 : vector<2x128xf32> to vector<2x1x128xf32>
    %72 = vector.shape_cast %40 : vector<2x128xf32> to vector<2x1x128xf32>
    %73 = vector.shape_cast %45 : vector<2x128xf32> to vector<2x1x128xf32>
    %74 = vector.shape_cast %50 : vector<2x128xf32> to vector<2x1x128xf32>
    %75 = vector.shape_cast %55 : vector<2x128xf32> to vector<2x1x128xf32>
    %76 = vector.shape_cast %61 : vector<2x128xf32> to vector<2x1x128xf32>
    %77 = tpu.concatenate %69, %70, %71, %72, %73, %74, %75, %76 in 1 : vector<2x1x128xf32>, vector<2x1x128xf32>, vector<2x1x128xf32>, vector<2x1x128xf32>, vector<2x1x128xf32>, vector<2x1x128xf32>, vector<2x1x128xf32>, vector<2x1x128xf32> -> vector<2x8x128xf32>
    %78 = vector.shape_cast %77 : vector<2x8x128xf32> to vector<16x128xf32>
    %c0_25 = arith.constant 0 : index
    %c0_26 = arith.constant 0 : index
    %79 = vector.load %arg5[%c0_25, %c0_26] : memref<128x8xf32, #tpu.memory_space<vmem>>, vector<128x8xf32>
    %cst_27 = arith.constant dense<0.000000e+00> : vector<16x8xf32>
    %80 = tpu.matmul %78, %79, %cst_27 {dimension_numbers = #tpu.dot_dimension_numbers<[1], [0], [0], [1], [0, 0, 1, 1], [], []>} : vector<16x128xf32>, vector<128x8xf32>, vector<16x8xf32> -> vector<16x8xf32>
    %c0_28 = arith.constant 0 : index
    %c0_29 = arith.constant 0 : index
    %81 = vector.load %arg6[%c0_28, %c0_29] : memref<1x8xf32, #tpu.memory_space<vmem>>, vector<1x8xf32>
    %82 = vector.broadcast %81 : vector<1x8xf32> to vector<16x8xf32>
    %83 = arith.addf %80, %82 : vector<16x8xf32>
    %c0_30 = arith.constant 0 : index
    %c0_31 = arith.constant 0 : index
    %84 = vector.load %arg7[%c0_30, %c0_31] : memref<16x8xf32, #tpu.memory_space<vmem>>, vector<16x8xf32>
    tpu.vector_store %arg7[%c0_30, %c0_31], %83 {strides = array<i32>} : memref<16x8xf32, #tpu.memory_space<vmem>>, vector<16x8xf32>,
    return
  }
}

</mosaic_0001>

<llo_original>
// kernel: rnn_forward.1
$region0: #{rnn_forward.1}
  #allocation0 [shape = 'u32[]', space=smem, size = 0x4, offset = 0x4, fixed_abs, tag = 'smem constant byte address 0x4 - core index']
  #allocation1 [shape = 'u32[144,128]{1,0:T(1,128)}', space=vmem, size = 0x12000, scoped, tag = 'internal scratch']
  %s0 = inlined_call_operand.vmem [shape: f32[8,2,8], index: 0, kind: input, shape index: {}]
  %s1 = inlined_call_operand.vmem [shape: f32[8,64], index: 1, kind: input, shape index: {}]
  %s2 = inlined_call_operand.vmem [shape: f32[1,64], index: 2, kind: input, shape index: {}]
  %s3 = inlined_call_operand.vmem [shape: f32[128,128], index: 3, kind: input, shape index: {}]
  %s4 = inlined_call_operand.vmem [shape: f32[1,64], index: 4, kind: input, shape index: {}]
  %s5 = inlined_call_operand.vmem [shape: f32[128,8], index: 5, kind: input, shape index: {}]
  %s6 = inlined_call_operand.vmem [shape: f32[1,8], index: 6, kind: input, shape index: {}]
  %s7 = inlined_call_operand.vmem [shape: f32[16,8], index: 7, kind: output, shape index: {0}]
  %s8 = inlined_call_operand.hbm [shape: f32[2,2,64], index: 8, kind: output, shape index: {1}]
  %9 = xla_tuple %s7, %s8
  %s10 = sld [smem:[#allocation0]]
  $region46: #{rnn_forward.1} parent=0
    _
  %s12 = ssub.s32 1, %s10
  %s13 = scalar_select 0, %s12, %s10
  $region1: #{rnn_forward.1} parent=0
    #allocation2 [shape = 'u8[2048]{0}', space=vmem, size = 0x800, scoped, tag = 'output window, operand 1, single buffered']
    #allocation3 [shape = 's32[1]{0}', space=sflag, size = 0x4, scoped, tag = 'scoped memory for rnn_forward.1']
    %14 = vsyncpa [#allocation3], 0
    // Predicated region
    $region2: #{rnn_forward.1} parent=1 // pred_check
      _
    $region3: #{rnn_forward.1} parent=1 // pred_check_branch
      %16 = sbr.rel (0) target = $region5
    $region4: #{rnn_forward.1} parent=1 // pred_region
      _
    $region5: #{rnn_forward.1} parent=1 // pred_fallthru
      _
    // Predicated region
    $region6: #{rnn_forward.1} parent=1 // pred_check
      _
    $region7: #{rnn_forward.1} parent=1 // pred_check_branch
      %18 = sbr.rel (0) target = $region9
    $region8: #{rnn_forward.1} parent=1 // pred_region
      _
    $region9: #{rnn_forward.1} parent=1 // pred_fallthru
      _
    // Predicated region
    $region10: #{rnn_forward.1} parent=1 // pred_check
      _
    $region11: #{rnn_forward.1} parent=1 // pred_check_branch
      %20 = sbr.rel (0) target = $region13
    $region12: #{rnn_forward.1} parent=1 // pred_region
      _
    $region13: #{rnn_forward.1} parent=1 // pred_fallthru
      _
    // Predicated region
    $region14: #{rnn_forward.1} parent=1 // pred_check
      _
    $region15: #{rnn_forward.1} parent=1 // pred_check_branch
      %22 = sbr.rel (0) target = $region17
    $region16: #{rnn_forward.1} parent=1 // pred_region
      _
    $region17: #{rnn_forward.1} parent=1 // pred_fallthru
      _
    // Predicated region
    $region18: #{rnn_forward.1} parent=1 // pred_check
      _
    $region19: #{rnn_forward.1} parent=1 // pred_check_branch
      %24 = sbr.rel (0) target = $region21
    $region20: #{rnn_forward.1} parent=1 // pred_region
      _
    $region21: #{rnn_forward.1} parent=1 // pred_fallthru
      _
    // Predicated region
    $region22: #{rnn_forward.1} parent=1 // pred_check
      _
    $region23: #{rnn_forward.1} parent=1 // pred_check_branch
      %26 = sbr.rel (0) target = $region25
    $region24: #{rnn_forward.1} parent=1 // pred_region
      _
    $region25: #{rnn_forward.1} parent=1 // pred_fallthru
      _
    // Predicated region
    $region26: #{rnn_forward.1} parent=1 // pred_check
      _
    $region27: #{rnn_forward.1} parent=1 // pred_check_branch
      %28 = sbr.rel (0) target = $region29
    $region28: #{rnn_forward.1} parent=1 // pred_region
      _
    $region29: #{rnn_forward.1} parent=1 // pred_fallthru
      _
    %v29 = vld [vmem:[%s0] sm:$0x3]
    %v30 = vld [vmem:[%s0 + $0x2] sm:$0x3]
    %v31 = vld [vmem:[%s0 + $0x4] sm:$0x3]
    %v32 = vld [vmem:[%s0 + $0x6] sm:$0x3]
    %v33 = vld [vmem:[%s0 + $0x8] sm:$0x3]
    %v34 = vld [vmem:[%s0 + $0xa] sm:$0x3]
    %v35 = vld [vmem:[%s0 + $0xc] sm:$0x3]
    %v36 = vld [vmem:[%s0 + $0xe] sm:$0x3]
    %v37 = vld [vmem:[%s1] sm:$0xff]
    %v38 = vld [vmem:[%s2] sm:$0x1]
    %v40 = vlaneseq
    %v41 = vshrl.u32 %v40, 7
    %v42 = vsub.s32 0, %v41
    %v43 = vrot.slane %v38, %v42
    %v53 = vcombine.low %v29, %v30
    %v54 = vcombine.low %v31, %v32
    %v56 = vunpack.c.l.s4 1983009808
    %v57 = vunpack.c.0.s8 %v56
    %v58 = vlaneseq
    %v59 = vshrl.u32 %v58, 7
    %v60 = vsub.s32 %v57, %v59
    %v61 = vrot.slane %v53, %v60
    %v63 = vunpack.c.l.s4 1983009808
    %v64 = vunpack.c.0.s8 %v63
    %v65 = vlaneseq
    %v66 = vshrl.u32 %v65, 7
    %v67 = vsub.s32 %v64, %v66
    %v68 = vrot.slane %v54, %v67
    %v69 = vcombine.low %v61, %v68
    %v70 = vcombine.low %v33, %v34
    %v71 = vcombine.low %v35, %v36
    %v73 = vunpack.c.l.s4 1983009808
    %v74 = vunpack.c.0.s8 %v73
    %v75 = vlaneseq
    %v76 = vshrl.u32 %v75, 7
    %v77 = vsub.s32 %v74, %v76
    %v78 = vrot.slane %v70, %v77
    %v80 = vunpack.c.l.s4 1983009808
    %v81 = vunpack.c.0.s8 %v80
    %v82 = vlaneseq
    %v83 = vshrl.u32 %v82, 7
    %v84 = vsub.s32 %v81, %v83
    %v85 = vrot.slane %v71, %v84
    %v86 = vcombine.low %v78, %v85
    %vm87 = vcmask 64512
    %v88 = vsel %vm87, %v69, 0
    %v90 = vsel %vm87, %v86, 0
    %92 = vmatprep.subr.mxu0 0.0
    %93 = vmatpush1.msra.mxu0 0.0
    %94 = vmatprep.subr.mxu0 0.0
    %95 = vmatpush1.msra.mxu0 0.0
    %96 = vmatprep.subr.mxu0 0.0
    %97 = vmatpush1.msra.mxu0 0.0
    %98 = vmatprep.subr.mxu0 0.0
    %99 = vmatpush1.msra.mxu0 0.0
    %100 = vmatprep.subr.mxu0 0.0
    %101 = vmatpush1.msra.mxu0 0.0
    %102 = vmatprep.subr.mxu0 0.0
    %103 = vmatpush1.msra.mxu0 0.0
    %104 = vmatprep.subr.mxu0 0.0
    %105 = vmatpush1.msra.mxu0 0.0
    %106 = vmatprep.subr.mxu0 0.0
    %107 = vmatpush1.msra.mxu0 0.0
    %108 = vmatprep.subr.mxu0 0.0
    %109 = vmatpush1.msra.mxu0 0.0
    %110 = vmatprep.subr.mxu0 0.0
    %111 = vmatpush1.msra.mxu0 0.0
    %112 = vmatprep.subr.mxu0 0.0
    %113 = vmatpush1.msra.mxu0 0.0
    %114 = vmatprep.subr.mxu0 0.0
    %115 = vmatpush1.msra.mxu0 0.0
    %116 = vmatprep.subr.mxu0 0.0
    %117 = vmatpush1.msra.mxu0 0.0
    %118 = vmatprep.subr.mxu0 0.0
    %119 = vmatpush1.msra.mxu0 0.0
    %120 = vmatprep.subr.mxu0 0.0
    %121 = vmatpush1.msra.mxu0 0.0
    %122 = vmatprep.subr.mxu0 0.0
    %123 = vmatpush1.msra.mxu0 %v37
    %124 = vmatprep.subr.mxu0 0.0
    %125 = vmatpush2.msra.mxu0 0.0
    %126 = vmatprep.subr.mxu0 0.0
    %127 = vmatpush2.msra.mxu0 0.0
    %128 = vmatprep.subr.mxu0 0.0
    %129 = vmatpush2.msra.mxu0 0.0
    %130 = vmatprep.subr.mxu0 0.0
    %131 = vmatpush2.msra.mxu0 0.0
    %132 = vmatprep.subr.mxu0 0.0
    %133 = vmatpush2.msra.mxu0 0.0
    %134 = vmatprep.subr.mxu0 0.0
    %135 = vmatpush2.msra.mxu0 0.0
    %136 = vmatprep.subr.mxu0 0.0
    %137 = vmatpush2.msra.mxu0 0.0
    %138 = vmatprep.subr.mxu0 0.0
    %139 = vmatpush2.msra.mxu0 0.0
    %140 = vmatprep.subr.mxu0 0.0
    %141 = vmatpush2.msra.mxu0 0.0
    %142 = vmatprep.subr.mxu0 0.0
    %143 = vmatpush2.msra.mxu0 0.0
    %144 = vmatprep.subr.mxu0 0.0
    %145 = vmatpush2.msra.mxu0 0.0
    %146 = vmatprep.subr.mxu0 0.0
    %147 = vmatpush2.msra.mxu0 0.0
    %148 = vmatprep.subr.mxu0 0.0
    %149 = vmatpush2.msra.mxu0 0.0
    %150 = vmatprep.subr.mxu0 0.0
    %151 = vmatpush2.msra.mxu0 0.0
    %152 = vmatprep.subr.mxu0 0.0
    %153 = vmatpush2.msra.mxu0 0.0
    %154 = vmatprep.subr.mxu0 0.0
    %155 = vmatpush2.msra.mxu0 0.0
    %156 = vmatprep.mubr.f32.mxu0 0.0
    %157 = vmatmul.mubr.f32.gmra.mxu0 %v88
    %v158 = vpop.f32.mrf.mxu0
    %v159 = vadd.f32 %v43, %v158
    %v160 = vpop.f32.mrf.mxu0
    %161 = vmatprep.mubr.f32.mxu0 0.0
    %162 = vmatmul.mubr.f32.gmra.mxu0 %v90
    %v163 = vpop.f32.mrf.mxu0
    %v164 = vadd.f32 %v43, %v163
    %v165 = vpop.f32.mrf.mxu0
    %166 = vdwg.mxu0
    %v169 = vcombine.high %v159, %v159
    %v171 = vunpack.c.l.s4 1983009808
    %v172 = vunpack.c.0.s8 %v171
    %v173 = vlaneseq
    %v174 = vshrl.u32 %v173, 7
    %v175 = vsub.s32 %v172, %v174
    %v176 = vrot.slane %v159, %v175
    %v178 = vunpack.c.l.s4 1983009808
    %v179 = vunpack.c.0.s8 %v178
    %v180 = vlaneseq
    %v181 = vshrl.u32 %v180, 7
    %v182 = vsub.s32 %v179, %v181
    %v183 = vrot.slane %v169, %v182
    %v184 = vcombine.high %v176, %v176
    %v185 = vcombine.high %v183, %v183
    %v186 = vcombine.high %v164, %v164
    %v188 = vunpack.c.l.s4 1983009808
    %v189 = vunpack.c.0.s8 %v188
    %v190 = vlaneseq
    %v191 = vshrl.u32 %v190, 7
    %v192 = vsub.s32 %v189, %v191
    %v193 = vrot.slane %v164, %v192
    %v195 = vunpack.c.l.s4 1983009808
    %v196 = vunpack.c.0.s8 %v195
    %v197 = vlaneseq
    %v198 = vshrl.u32 %v197, 7
    %v199 = vsub.s32 %v196, %v198
    %v200 = vrot.slane %v186, %v199
    %v201 = vcombine.high %v193, %v193
    %v202 = vcombine.high %v200, %v200
    %v211 = vld [vmem:[%s4] sm:$0x1]
    %v213 = vlaneseq
    %v214 = vshrl.u32 %v213, 7
    %v215 = vsub.s32 0, %v214
    %v216 = vrot.slane %v211, %v215
    %217 = vrot.lane.b32.xlu0 %v216, 64
    %v218 = vpop.permute.xlu0 %217
    %vm220 = vcmask 523264
    %v221 = vsel %vm220, %v184, %v218
    %v222 = vsel %vm220, %v183, %v218
    %v223 = vsel %vm220, %v185, %v218
    %v224 = vsel %vm220, %v193, %v218
    %v225 = vsel %vm220, %v201, %v218
    %v226 = vsel %vm220, %v200, %v218
    %v227 = vsel %vm220, %v202, %v218
    %v228 = vsel %vm220, 0.0, %v218
    %v229 = vld [vmem:[%s3] sm:$0xff]
    %v230 = vld [vmem:[%s3 + $0x8] sm:$0xff]
    %v231 = vld [vmem:[%s3 + $0x10] sm:$0xff]
    %v232 = vld [vmem:[%s3 + $0x18] sm:$0xff]
    %v233 = vld [vmem:[%s3 + $0x20] sm:$0xff]
    %v234 = vld [vmem:[%s3 + $0x28] sm:$0xff]
    %v235 = vld [vmem:[%s3 + $0x30] sm:$0xff]
    %v236 = vld [vmem:[%s3 + $0x38] sm:$0xff]
    %v237 = vld [vmem:[%s3 + $0x40] sm:$0xff]
    %v238 = vld [vmem:[%s3 + $0x48] sm:$0xff]
    %v239 = vld [vmem:[%s3 + $0x50] sm:$0xff]
    %v240 = vld [vmem:[%s3 + $0x58] sm:$0xff]
    %v241 = vld [vmem:[%s3 + $0x60] sm:$0xff]
    %v242 = vld [vmem:[%s3 + $0x68] sm:$0xff]
    %v243 = vld [vmem:[%s3 + $0x70] sm:$0xff]
    %v244 = vld [vmem:[%s3 + $0x78] sm:$0xff]
    %v245 = vtanh.pop %v176
    %v246 = vsel %vm220, %v245, 0.0
    %247 = vmatprep.subr.mxu0 0.0
    %248 = vmatpush1.msra.mxu0 %v244
    %249 = vmatprep.subr.mxu0 0.0
    %250 = vmatpush1.msra.mxu0 %v243
    %251 = vmatprep.subr.mxu0 0.0
    %252 = vmatpush1.msra.mxu0 %v242
    %253 = vmatprep.subr.mxu0 0.0
    %254 = vmatpush1.msra.mxu0 %v241
    %255 = vmatprep.subr.mxu0 0.0
    %256 = vmatpush1.msra.mxu0 %v240
    %257 = vmatprep.subr.mxu0 0.0
    %258 = vmatpush1.msra.mxu0 %v239
    %259 = vmatprep.subr.mxu0 0.0
    %260 = vmatpush1.msra.mxu0 %v238
    %261 = vmatprep.subr.mxu0 0.0
    %262 = vmatpush1.msra.mxu0 %v237
    %263 = vmatprep.subr.mxu0 0.0
    %264 = vmatpush1.msra.mxu0 %v236
    %265 = vmatprep.subr.mxu0 0.0
    %266 = vmatpush1.msra.mxu0 %v235
    %267 = vmatprep.subr.mxu0 0.0
    %268 = vmatpush1.msra.mxu0 %v234
    %269 = vmatprep.subr.mxu0 0.0
    %270 = vmatpush1.msra.mxu0 %v233
    %271 = vmatprep.subr.mxu0 0.0
    %272 = vmatpush1.msra.mxu0 %v232
    %273 = vmatprep.subr.mxu0 0.0
    %274 = vmatpush1.msra.mxu0 %v231
    %275 = vmatprep.subr.mxu0 0.0
    %276 = vmatpush1.msra.mxu0 %v230
    %277 = vmatprep.subr.mxu0 0.0
    %278 = vmatpush1.msra.mxu0 %v229
    %279 = vmatprep.subr.mxu0 0.0
    %280 = vmatpush2.msra.mxu0 0.0
    %281 = vmatprep.subr.mxu0 0.0
    %282 = vmatpush2.msra.mxu0 0.0
    %283 = vmatprep.subr.mxu0 0.0
    %284 = vmatpush2.msra.mxu0 0.0
    %285 = vmatprep.subr.mxu0 0.0
    %286 = vmatpush2.msra.mxu0 0.0
    %287 = vmatprep.subr.mxu0 0.0
    %288 = vmatpush2.msra.mxu0 0.0
    %289 = vmatprep.subr.mxu0 0.0
    %290 = vmatpush2.msra.mxu0 0.0
    %291 = vmatprep.subr.mxu0 0.0
    %292 = vmatpush2.msra.mxu0 0.0
    %293 = vmatprep.subr.mxu0 0.0
    %294 = vmatpush2.msra.mxu0 0.0
    %295 = vmatprep.subr.mxu0 0.0
    %296 = vmatpush2.msra.mxu0 0.0
    %297 = vmatprep.subr.mxu0 0.0
    %298 = vmatpush2.msra.mxu0 0.0
    %299 = vmatprep.subr.mxu0 0.0
    %300 = vmatpush2.msra.mxu0 0.0
    %301 = vmatprep.subr.mxu0 0.0
    %302 = vmatpush2.msra.mxu0 0.0
    %303 = vmatprep.subr.mxu0 0.0
    %304 = vmatpush2.msra.mxu0 0.0
    %305 = vmatprep.subr.mxu0 0.0
    %306 = vmatpush2.msra.mxu0 0.0
    %307 = vmatprep.subr.mxu0 0.0
    %308 = vmatpush2.msra.mxu0 0.0
    %309 = vmatprep.subr.mxu0 0.0
    %310 = vmatpush2.msra.mxu0 0.0
    %311 = vmatprep.mubr.f32.mxu0 0.0
    %312 = vmatmul.mubr.f32.gmra.mxu0 %v246
    %v313 = vpop.f32.mrf.mxu0
    %v314 = vadd.f32 %v221, %v313
    %v315 = vpop.f32.mrf.mxu0
    %316 = vdwg.mxu0
    %v317 = vtanh.pop %v314
    %318 = vmatprep.subr.mxu0 0.0
    %319 = vmatpush1.msra.mxu0 %v244
    %320 = vmatprep.subr.mxu0 0.0
    %321 = vmatpush1.msra.mxu0 %v243
    %322 = vmatprep.subr.mxu0 0.0
    %323 = vmatpush1.msra.mxu0 %v242
    %324 = vmatprep.subr.mxu0 0.0
    %325 = vmatpush1.msra.mxu0 %v241
    %326 = vmatprep.subr.mxu0 0.0
    %327 = vmatpush1.msra.mxu0 %v240
    %328 = vmatprep.subr.mxu0 0.0
    %329 = vmatpush1.msra.mxu0 %v239
    %330 = vmatprep.subr.mxu0 0.0
    %331 = vmatpush1.msra.mxu0 %v238
    %332 = vmatprep.subr.mxu0 0.0
    %333 = vmatpush1.msra.mxu0 %v237
    %334 = vmatprep.subr.mxu0 0.0
    %335 = vmatpush1.msra.mxu0 %v236
    %336 = vmatprep.subr.mxu0 0.0
    %337 = vmatpush1.msra.mxu0 %v235
    %338 = vmatprep.subr.mxu0 0.0
    %339 = vmatpush1.msra.mxu0 %v234
    %340 = vmatprep.subr.mxu0 0.0
    %341 = vmatpush1.msra.mxu0 %v233
    %342 = vmatprep.subr.mxu0 0.0
    %343 = vmatpush1.msra.mxu0 %v232
    %344 = vmatprep.subr.mxu0 0.0
    %345 = vmatpush1.msra.mxu0 %v231
    %346 = vmatprep.subr.mxu0 0.0
    %347 = vmatpush1.msra.mxu0 %v230
    %348 = vmatprep.subr.mxu0 0.0
    %349 = vmatpush1.msra.mxu0 %v229
    %350 = vmatprep.subr.mxu0 0.0
    %351 = vmatpush2.msra.mxu0 0.0
    %352 = vmatprep.subr.mxu0 0.0
    %353 = vmatpush2.msra.mxu0 0.0
    %354 = vmatprep.subr.mxu0 0.0
    %355 = vmatpush2.msra.mxu0 0.0
    %356 = vmatprep.subr.mxu0 0.0
    %357 = vmatpush2.msra.mxu0 0.0
    %358 = vmatprep.subr.mxu0 0.0
    %359 = vmatpush2.msra.mxu0 0.0
    %360 = vmatprep.subr.mxu0 0.0
    %361 = vmatpush2.msra.mxu0 0.0
    %362 = vmatprep.subr.mxu0 0.0
    %363 = vmatpush2.msra.mxu0 0.0
    %364 = vmatprep.subr.mxu0 0.0
    %365 = vmatpush2.msra.mxu0 0.0
    %366 = vmatprep.subr.mxu0 0.0
    %367 = vmatpush2.msra.mxu0 0.0
    %368 = vmatprep.subr.mxu0 0.0
    %369 = vmatpush2.msra.mxu0 0.0
    %370 = vmatprep.subr.mxu0 0.0
    %371 = vmatpush2.msra.mxu0 0.0
    %372 = vmatprep.subr.mxu0 0.0
    %373 = vmatpush2.msra.mxu0 0.0
    %374 = vmatprep.subr.mxu0 0.0
    %375 = vmatpush2.msra.mxu0 0.0
    %376 = vmatprep.subr.mxu0 0.0
    %377 = vmatpush2.msra.mxu0 0.0
    %378 = vmatprep.subr.mxu0 0.0
    %379 = vmatpush2.msra.mxu0 0.0
    %380 = vmatprep.subr.mxu0 0.0
    %381 = vmatpush2.msra.mxu0 0.0
    %382 = vmatprep.mubr.f32.mxu0 0.0
    %383 = vmatmul.mubr.f32.gmra.mxu0 %v317
    %v384 = vpop.f32.mrf.mxu0
    %v385 = vadd.f32 %v222, %v384
    %v386 = vpop.f32.mrf.mxu0
    %387 = vdwg.mxu0
    %v388 = vtanh.pop %v385
    %389 = vmatprep.subr.mxu0 0.0
    %390 = vmatpush1.msra.mxu0 %v244
    %391 = vmatprep.subr.mxu0 0.0
    %392 = vmatpush1.msra.mxu0 %v243
    %393 = vmatprep.subr.mxu0 0.0
    %394 = vmatpush1.msra.mxu0 %v242
    %395 = vmatprep.subr.mxu0 0.0
    %396 = vmatpush1.msra.mxu0 %v241
    %397 = vmatprep.subr.mxu0 0.0
    %398 = vmatpush1.msra.mxu0 %v240
    %399 = vmatprep.subr.mxu0 0.0
    %400 = vmatpush1.msra.mxu0 %v239
    %401 = vmatprep.subr.mxu0 0.0
    %402 = vmatpush1.msra.mxu0 %v238
    %403 = vmatprep.subr.mxu0 0.0
    %404 = vmatpush1.msra.mxu0 %v237
    %405 = vmatprep.subr.mxu0 0.0
    %406 = vmatpush1.msra.mxu0 %v236
    %407 = vmatprep.subr.mxu0 0.0
    %408 = vmatpush1.msra.mxu0 %v235
    %409 = vmatprep.subr.mxu0 0.0
    %410 = vmatpush1.msra.mxu0 %v234
    %411 = vmatprep.subr.mxu0 0.0
    %412 = vmatpush1.msra.mxu0 %v233
    %413 = vmatprep.subr.mxu0 0.0
    %414 = vmatpush1.msra.mxu0 %v232
    %415 = vmatprep.subr.mxu0 0.0
    %416 = vmatpush1.msra.mxu0 %v231
    %417 = vmatprep.subr.mxu0 0.0
    %418 = vmatpush1.msra.mxu0 %v230
    %419 = vmatprep.subr.mxu0 0.0
    %420 = vmatpush1.msra.mxu0 %v229
    %421 = vmatprep.subr.mxu0 0.0
    %422 = vmatpush2.msra.mxu0 0.0
    %423 = vmatprep.subr.mxu0 0.0
    %424 = vmatpush2.msra.mxu0 0.0
    %425 = vmatprep.subr.mxu0 0.0
    %426 = vmatpush2.msra.mxu0 0.0
    %427 = vmatprep.subr.mxu0 0.0
    %428 = vmatpush2.msra.mxu0 0.0
    %429 = vmatprep.subr.mxu0 0.0
    %430 = vmatpush2.msra.mxu0 0.0
    %431 = vmatprep.subr.mxu0 0.0
    %432 = vmatpush2.msra.mxu0 0.0
    %433 = vmatprep.subr.mxu0 0.0
    %434 = vmatpush2.msra.mxu0 0.0
    %435 = vmatprep.subr.mxu0 0.0
    %436 = vmatpush2.msra.mxu0 0.0
    %437 = vmatprep.subr.mxu0 0.0
    %438 = vmatpush2.msra.mxu0 0.0
    %439 = vmatprep.subr.mxu0 0.0
    %440 = vmatpush2.msra.mxu0 0.0
    %441 = vmatprep.subr.mxu0 0.0
    %442 = vmatpush2.msra.mxu0 0.0
    %443 = vmatprep.subr.mxu0 0.0
    %444 = vmatpush2.msra.mxu0 0.0
    %445 = vmatprep.subr.mxu0 0.0
    %446 = vmatpush2.msra.mxu0 0.0
    %447 = vmatprep.subr.mxu0 0.0
    %448 = vmatpush2.msra.mxu0 0.0
    %449 = vmatprep.subr.mxu0 0.0
    %450 = vmatpush2.msra.mxu0 0.0
    %451 = vmatprep.subr.mxu0 0.0
    %452 = vmatpush2.msra.mxu0 0.0
    %453 = vmatprep.mubr.f32.mxu0 0.0
    %454 = vmatmul.mubr.f32.gmra.mxu0 %v388
    %v455 = vpop.f32.mrf.mxu0
    %v456 = vadd.f32 %v223, %v455
    %v457 = vpop.f32.mrf.mxu0
    %458 = vdwg.mxu0
    %v459 = vtanh.pop %v456
    %460 = vmatprep.subr.mxu0 0.0
    %461 = vmatpush1.msra.mxu0 %v244
    %462 = vmatprep.subr.mxu0 0.0
    %463 = vmatpush1.msra.mxu0 %v243
    %464 = vmatprep.subr.mxu0 0.0
    %465 = vmatpush1.msra.mxu0 %v242
    %466 = vmatprep.subr.mxu0 0.0
    %467 = vmatpush1.msra.mxu0 %v241
    %468 = vmatprep.subr.mxu0 0.0
    %469 = vmatpush1.msra.mxu0 %v240
    %470 = vmatprep.subr.mxu0 0.0
    %471 = vmatpush1.msra.mxu0 %v239
    %472 = vmatprep.subr.mxu0 0.0
    %473 = vmatpush1.msra.mxu0 %v238
    %474 = vmatprep.subr.mxu0 0.0
    %475 = vmatpush1.msra.mxu0 %v237
    %476 = vmatprep.subr.mxu0 0.0
    %477 = vmatpush1.msra.mxu0 %v236
    %478 = vmatprep.subr.mxu0 0.0
    %479 = vmatpush1.msra.mxu0 %v235
    %480 = vmatprep.subr.mxu0 0.0
    %481 = vmatpush1.msra.mxu0 %v234
    %482 = vmatprep.subr.mxu0 0.0
    %483 = vmatpush1.msra.mxu0 %v233
    %484 = vmatprep.subr.mxu0 0.0
    %485 = vmatpush1.msra.mxu0 %v232
    %486 = vmatprep.subr.mxu0 0.0
    %487 = vmatpush1.msra.mxu0 %v231
    %488 = vmatprep.subr.mxu0 0.0
    %489 = vmatpush1.msra.mxu0 %v230
    %490 = vmatprep.subr.mxu0 0.0
    %491 = vmatpush1.msra.mxu0 %v229
    %492 = vmatprep.subr.mxu0 0.0
    %493 = vmatpush2.msra.mxu0 0.0
    %494 = vmatprep.subr.mxu0 0.0
    %495 = vmatpush2.msra.mxu0 0.0
    %496 = vmatprep.subr.mxu0 0.0
    %497 = vmatpush2.msra.mxu0 0.0
    %498 = vmatprep.subr.mxu0 0.0
    %499 = vmatpush2.msra.mxu0 0.0
    %500 = vmatprep.subr.mxu0 0.0
    %501 = vmatpush2.msra.mxu0 0.0
    %502 = vmatprep.subr.mxu0 0.0
    %503 = vmatpush2.msra.mxu0 0.0
    %504 = vmatprep.subr.mxu0 0.0
    %505 = vmatpush2.msra.mxu0 0.0
    %506 = vmatprep.subr.mxu0 0.0
    %507 = vmatpush2.msra.mxu0 0.0
    %508 = vmatprep.subr.mxu0 0.0
    %509 = vmatpush2.msra.mxu0 0.0
    %510 = vmatprep.subr.mxu0 0.0
    %511 = vmatpush2.msra.mxu0 0.0
    %512 = vmatprep.subr.mxu0 0.0
    %513 = vmatpush2.msra.mxu0 0.0
    %514 = vmatprep.subr.mxu0 0.0
    %515 = vmatpush2.msra.mxu0 0.0
    %516 = vmatprep.subr.mxu0 0.0
    %517 = vmatpush2.msra.mxu0 0.0
    %518 = vmatprep.subr.mxu0 0.0
    %519 = vmatpush2.msra.mxu0 0.0
    %520 = vmatprep.subr.mxu0 0.0
    %521 = vmatpush2.msra.mxu0 0.0
    %522 = vmatprep.subr.mxu0 0.0
    %523 = vmatpush2.msra.mxu0 0.0
    %524 = vmatprep.mubr.f32.mxu0 0.0
    %525 = vmatmul.mubr.f32.gmra.mxu0 %v459
    %v526 = vpop.f32.mrf.mxu0
    %v527 = vadd.f32 %v224, %v526
    %v528 = vpop.f32.mrf.mxu0
    %529 = vdwg.mxu0
    %v530 = vtanh.pop %v527
    %531 = vmatprep.subr.mxu0 0.0
    %532 = vmatpush1.msra.mxu0 %v244
    %533 = vmatprep.subr.mxu0 0.0
    %534 = vmatpush1.msra.mxu0 %v243
    %535 = vmatprep.subr.mxu0 0.0
    %536 = vmatpush1.msra.mxu0 %v242
    %537 = vmatprep.subr.mxu0 0.0
    %538 = vmatpush1.msra.mxu0 %v241
    %539 = vmatprep.subr.mxu0 0.0
    %540 = vmatpush1.msra.mxu0 %v240
    %541 = vmatprep.subr.mxu0 0.0
    %542 = vmatpush1.msra.mxu0 %v239
    %543 = vmatprep.subr.mxu0 0.0
    %544 = vmatpush1.msra.mxu0 %v238
    %545 = vmatprep.subr.mxu0 0.0
    %546 = vmatpush1.msra.mxu0 %v237
    %547 = vmatprep.subr.mxu0 0.0
    %548 = vmatpush1.msra.mxu0 %v236
    %549 = vmatprep.subr.mxu0 0.0
    %550 = vmatpush1.msra.mxu0 %v235
    %551 = vmatprep.subr.mxu0 0.0
    %552 = vmatpush1.msra.mxu0 %v234
    %553 = vmatprep.subr.mxu0 0.0
    %554 = vmatpush1.msra.mxu0 %v233
    %555 = vmatprep.subr.mxu0 0.0
    %556 = vmatpush1.msra.mxu0 %v232
    %557 = vmatprep.subr.mxu0 0.0
    %558 = vmatpush1.msra.mxu0 %v231
    %559 = vmatprep.subr.mxu0 0.0
    %560 = vmatpush1.msra.mxu0 %v230
    %561 = vmatprep.subr.mxu0 0.0
    %562 = vmatpush1.msra.mxu0 %v229
    %563 = vmatprep.subr.mxu0 0.0
    %564 = vmatpush2.msra.mxu0 0.0
    %565 = vmatprep.subr.mxu0 0.0
    %566 = vmatpush2.msra.mxu0 0.0
    %567 = vmatprep.subr.mxu0 0.0
    %568 = vmatpush2.msra.mxu0 0.0
    %569 = vmatprep.subr.mxu0 0.0
    %570 = vmatpush2.msra.mxu0 0.0
    %571 = vmatprep.subr.mxu0 0.0
    %572 = vmatpush2.msra.mxu0 0.0
    %573 = vmatprep.subr.mxu0 0.0
    %574 = vmatpush2.msra.mxu0 0.0
    %575 = vmatprep.subr.mxu0 0.0
    %576 = vmatpush2.msra.mxu0 0.0
    %577 = vmatprep.subr.mxu0 0.0
    %578 = vmatpush2.msra.mxu0 0.0
    %579 = vmatprep.subr.mxu0 0.0
    %580 = vmatpush2.msra.mxu0 0.0
    %581 = vmatprep.subr.mxu0 0.0
    %582 = vmatpush2.msra.mxu0 0.0
    %583 = vmatprep.subr.mxu0 0.0
    %584 = vmatpush2.msra.mxu0 0.0
    %585 = vmatprep.subr.mxu0 0.0
    %586 = vmatpush2.msra.mxu0 0.0
    %587 = vmatprep.subr.mxu0 0.0
    %588 = vmatpush2.msra.mxu0 0.0
    %589 = vmatprep.subr.mxu0 0.0
    %590 = vmatpush2.msra.mxu0 0.0
    %591 = vmatprep.subr.mxu0 0.0
    %592 = vmatpush2.msra.mxu0 0.0
    %593 = vmatprep.subr.mxu0 0.0
    %594 = vmatpush2.msra.mxu0 0.0
    %595 = vmatprep.mubr.f32.mxu0 0.0
    %596 = vmatmul.mubr.f32.gmra.mxu0 %v530
    %v597 = vpop.f32.mrf.mxu0
    %v598 = vadd.f32 %v225, %v597
    %v599 = vpop.f32.mrf.mxu0
    %600 = vdwg.mxu0
    %v601 = vtanh.pop %v598
    %602 = vmatprep.subr.mxu0 0.0
    %603 = vmatpush1.msra.mxu0 %v244
    %604 = vmatprep.subr.mxu0 0.0
    %605 = vmatpush1.msra.mxu0 %v243
    %606 = vmatprep.subr.mxu0 0.0
    %607 = vmatpush1.msra.mxu0 %v242
    %608 = vmatprep.subr.mxu0 0.0
    %609 = vmatpush1.msra.mxu0 %v241
    %610 = vmatprep.subr.mxu0 0.0
    %611 = vmatpush1.msra.mxu0 %v240
    %612 = vmatprep.subr.mxu0 0.0
    %613 = vmatpush1.msra.mxu0 %v239
    %614 = vmatprep.subr.mxu0 0.0
    %615 = vmatpush1.msra.mxu0 %v238
    %616 = vmatprep.subr.mxu0 0.0
    %617 = vmatpush1.msra.mxu0 %v237
    %618 = vmatprep.subr.mxu0 0.0
    %619 = vmatpush1.msra.mxu0 %v236
    %620 = vmatprep.subr.mxu0 0.0
    %621 = vmatpush1.msra.mxu0 %v235
    %622 = vmatprep.subr.mxu0 0.0
    %623 = vmatpush1.msra.mxu0 %v234
    %624 = vmatprep.subr.mxu0 0.0
    %625 = vmatpush1.msra.mxu0 %v233
    %626 = vmatprep.subr.mxu0 0.0
    %627 = vmatpush1.msra.mxu0 %v232
    %628 = vmatprep.subr.mxu0 0.0
    %629 = vmatpush1.msra.mxu0 %v231
    %630 = vmatprep.subr.mxu0 0.0
    %631 = vmatpush1.msra.mxu0 %v230
    %632 = vmatprep.subr.mxu0 0.0
    %633 = vmatpush1.msra.mxu0 %v229
    %634 = vmatprep.subr.mxu0 0.0
    %635 = vmatpush2.msra.mxu0 0.0
    %636 = vmatprep.subr.mxu0 0.0
    %637 = vmatpush2.msra.mxu0 0.0
    %638 = vmatprep.subr.mxu0 0.0
    %639 = vmatpush2.msra.mxu0 0.0
    %640 = vmatprep.subr.mxu0 0.0
    %641 = vmatpush2.msra.mxu0 0.0
    %642 = vmatprep.subr.mxu0 0.0
    %643 = vmatpush2.msra.mxu0 0.0
    %644 = vmatprep.subr.mxu0 0.0
    %645 = vmatpush2.msra.mxu0 0.0
    %646 = vmatprep.subr.mxu0 0.0
    %647 = vmatpush2.msra.mxu0 0.0
    %648 = vmatprep.subr.mxu0 0.0
    %649 = vmatpush2.msra.mxu0 0.0
    %650 = vmatprep.subr.mxu0 0.0
    %651 = vmatpush2.msra.mxu0 0.0
    %652 = vmatprep.subr.mxu0 0.0
    %653 = vmatpush2.msra.mxu0 0.0
    %654 = vmatprep.subr.mxu0 0.0
    %655 = vmatpush2.msra.mxu0 0.0
    %656 = vmatprep.subr.mxu0 0.0
    %657 = vmatpush2.msra.mxu0 0.0
    %658 = vmatprep.subr.mxu0 0.0
    %659 = vmatpush2.msra.mxu0 0.0
    %660 = vmatprep.subr.mxu0 0.0
    %661 = vmatpush2.msra.mxu0 0.0
    %662 = vmatprep.subr.mxu0 0.0
    %663 = vmatpush2.msra.mxu0 0.0
    %664 = vmatprep.subr.mxu0 0.0
    %665 = vmatpush2.msra.mxu0 0.0
    %666 = vmatprep.mubr.f32.mxu0 0.0
    %667 = vmatmul.mubr.f32.gmra.mxu0 %v601
    %v668 = vpop.f32.mrf.mxu0
    %v669 = vadd.f32 %v226, %v668
    %v670 = vpop.f32.mrf.mxu0
    %671 = vdwg.mxu0
    %v672 = vtanh.pop %v669
    %673 = vmatprep.subr.mxu0 0.0
    %674 = vmatpush1.msra.mxu0 %v244
    %675 = vmatprep.subr.mxu0 0.0
    %676 = vmatpush1.msra.mxu0 %v243
    %677 = vmatprep.subr.mxu0 0.0
    %678 = vmatpush1.msra.mxu0 %v242
    %679 = vmatprep.subr.mxu0 0.0
    %680 = vmatpush1.msra.mxu0 %v241
    %681 = vmatprep.subr.mxu0 0.0
    %682 = vmatpush1.msra.mxu0 %v240
    %683 = vmatprep.subr.mxu0 0.0
    %684 = vmatpush1.msra.mxu0 %v239
    %685 = vmatprep.subr.mxu0 0.0
    %686 = vmatpush1.msra.mxu0 %v238
    %687 = vmatprep.subr.mxu0 0.0
    %688 = vmatpush1.msra.mxu0 %v237
    %689 = vmatprep.subr.mxu0 0.0
    %690 = vmatpush1.msra.mxu0 %v236
    %691 = vmatprep.subr.mxu0 0.0
    %692 = vmatpush1.msra.mxu0 %v235
    %693 = vmatprep.subr.mxu0 0.0
    %694 = vmatpush1.msra.mxu0 %v234
    %695 = vmatprep.subr.mxu0 0.0
    %696 = vmatpush1.msra.mxu0 %v233
    %697 = vmatprep.subr.mxu0 0.0
    %698 = vmatpush1.msra.mxu0 %v232
    %699 = vmatprep.subr.mxu0 0.0
    %700 = vmatpush1.msra.mxu0 %v231
    %701 = vmatprep.subr.mxu0 0.0
    %702 = vmatpush1.msra.mxu0 %v230
    %703 = vmatprep.subr.mxu0 0.0
    %704 = vmatpush1.msra.mxu0 %v229
    %705 = vmatprep.subr.mxu0 0.0
    %706 = vmatpush2.msra.mxu0 0.0
    %707 = vmatprep.subr.mxu0 0.0
    %708 = vmatpush2.msra.mxu0 0.0
    %709 = vmatprep.subr.mxu0 0.0
    %710 = vmatpush2.msra.mxu0 0.0
    %711 = vmatprep.subr.mxu0 0.0
    %712 = vmatpush2.msra.mxu0 0.0
    %713 = vmatprep.subr.mxu0 0.0
    %714 = vmatpush2.msra.mxu0 0.0
    %715 = vmatprep.subr.mxu0 0.0
    %716 = vmatpush2.msra.mxu0 0.0
    %717 = vmatprep.subr.mxu0 0.0
    %718 = vmatpush2.msra.mxu0 0.0
    %719 = vmatprep.subr.mxu0 0.0
    %720 = vmatpush2.msra.mxu0 0.0
    %721 = vmatprep.subr.mxu0 0.0
    %722 = vmatpush2.msra.mxu0 0.0
    %723 = vmatprep.subr.mxu0 0.0
    %724 = vmatpush2.msra.mxu0 0.0
    %725 = vmatprep.subr.mxu0 0.0
    %726 = vmatpush2.msra.mxu0 0.0
    %727 = vmatprep.subr.mxu0 0.0
    %728 = vmatpush2.msra.mxu0 0.0
    %729 = vmatprep.subr.mxu0 0.0
    %730 = vmatpush2.msra.mxu0 0.0
    %731 = vmatprep.subr.mxu0 0.0
    %732 = vmatpush2.msra.mxu0 0.0
    %733 = vmatprep.subr.mxu0 0.0
    %734 = vmatpush2.msra.mxu0 0.0
    %735 = vmatprep.subr.mxu0 0.0
    %736 = vmatpush2.msra.mxu0 0.0
    %737 = vmatprep.mubr.f32.mxu0 0.0
    %738 = vmatmul.mubr.f32.gmra.mxu0 %v672
    %v739 = vpop.f32.mrf.mxu0
    %v740 = vadd.f32 %v227, %v739
    %v741 = vpop.f32.mrf.mxu0
    %742 = vdwg.mxu0
    %v743 = vtanh.pop %v740
    %744 = vmatprep.subr.mxu0 0.0
    %745 = vmatpush1.msra.mxu0 %v244
    %746 = vmatprep.subr.mxu0 0.0
    %747 = vmatpush1.msra.mxu0 %v243
    %748 = vmatprep.subr.mxu0 0.0
    %749 = vmatpush1.msra.mxu0 %v242
    %750 = vmatprep.subr.mxu0 0.0
    %751 = vmatpush1.msra.mxu0 %v241
    %752 = vmatprep.subr.mxu0 0.0
    %753 = vmatpush1.msra.mxu0 %v240
    %754 = vmatprep.subr.mxu0 0.0
    %755 = vmatpush1.msra.mxu0 %v239
    %756 = vmatprep.subr.mxu0 0.0
    %757 = vmatpush1.msra.mxu0 %v238
    %758 = vmatprep.subr.mxu0 0.0
    %759 = vmatpush1.msra.mxu0 %v237
    %760 = vmatprep.subr.mxu0 0.0
    %761 = vmatpush1.msra.mxu0 %v236
    %762 = vmatprep.subr.mxu0 0.0
    %763 = vmatpush1.msra.mxu0 %v235
    %764 = vmatprep.subr.mxu0 0.0
    %765 = vmatpush1.msra.mxu0 %v234
    %766 = vmatprep.subr.mxu0 0.0
    %767 = vmatpush1.msra.mxu0 %v233
    %768 = vmatprep.subr.mxu0 0.0
    %769 = vmatpush1.msra.mxu0 %v232
    %770 = vmatprep.subr.mxu0 0.0
    %771 = vmatpush1.msra.mxu0 %v231
    %772 = vmatprep.subr.mxu0 0.0
    %773 = vmatpush1.msra.mxu0 %v230
    %774 = vmatprep.subr.mxu0 0.0
    %775 = vmatpush1.msra.mxu0 %v229
    %776 = vmatprep.subr.mxu0 0.0
    %777 = vmatpush2.msra.mxu0 0.0
    %778 = vmatprep.subr.mxu0 0.0
    %779 = vmatpush2.msra.mxu0 0.0
    %780 = vmatprep.subr.mxu0 0.0
    %781 = vmatpush2.msra.mxu0 0.0
    %782 = vmatprep.subr.mxu0 0.0
    %783 = vmatpush2.msra.mxu0 0.0
    %784 = vmatprep.subr.mxu0 0.0
    %785 = vmatpush2.msra.mxu0 0.0
    %786 = vmatprep.subr.mxu0 0.0
    %787 = vmatpush2.msra.mxu0 0.0
    %788 = vmatprep.subr.mxu0 0.0
    %789 = vmatpush2.msra.mxu0 0.0
    %790 = vmatprep.subr.mxu0 0.0
    %791 = vmatpush2.msra.mxu0 0.0
    %792 = vmatprep.subr.mxu0 0.0
    %793 = vmatpush2.msra.mxu0 0.0
    %794 = vmatprep.subr.mxu0 0.0
    %795 = vmatpush2.msra.mxu0 0.0
    %796 = vmatprep.subr.mxu0 0.0
    %797 = vmatpush2.msra.mxu0 0.0
    %798 = vmatprep.subr.mxu0 0.0
    %799 = vmatpush2.msra.mxu0 0.0
    %800 = vmatprep.subr.mxu0 0.0
    %801 = vmatpush2.msra.mxu0 0.0
    %802 = vmatprep.subr.mxu0 0.0
    %803 = vmatpush2.msra.mxu0 0.0
    %804 = vmatprep.subr.mxu0 0.0
    %805 = vmatpush2.msra.mxu0 0.0
    %806 = vmatprep.subr.mxu0 0.0
    %807 = vmatpush2.msra.mxu0 0.0
    %808 = vmatprep.mubr.f32.mxu0 0.0
    %809 = vmatmul.mubr.f32.gmra.mxu0 %v743
    %v810 = vpop.f32.mrf.mxu0
    %v811 = vadd.f32 %v228, %v810
    %v812 = vpop.f32.mrf.mxu0
    %813 = vdwg.mxu0
    %v814 = vtanh.pop %v811
    %vm815 = vcmask 517120
    %816 = vst.msk [vmem:[#allocation2] sm:$0x3] %vm815, %v743
    %818 = vrot.lane.b32.xlu0 %v814, 64
    %v819 = vpop.permute.xlu0 %818
    %s821 = scalar_lea.vmem [#allocation2], 2
    %822 = vst.msk [vmem:[%s821] sm:$0x3] %vm815, %v819
    %v825 = vunpack.c.l.s4 1966171168
    %v826 = vunpack.c.0.s8 %v825
    %v827 = vlaneseq
    %v828 = vshrl.u32 %v827, 7
    %v829 = vsub.s32 %v826, %v828
    %v830 = vrot.slane %v317, %v829
    %v831 = vcombine.high %v830, %v830
    %v833 = vunpack.c.l.s4 1966171168
    %v834 = vunpack.c.0.s8 %v833
    %v835 = vlaneseq
    %v836 = vshrl.u32 %v835, 7
    %v837 = vsub.s32 %v834, %v836
    %v838 = vrot.slane %v830, %v837
    %v840 = vunpack.c.l.s4 1966171168
    %v841 = vunpack.c.0.s8 %v840
    %v842 = vlaneseq
    %v843 = vshrl.u32 %v842, 7
    %v844 = vsub.s32 %v841, %v843
    %v845 = vrot.slane %v831, %v844
    %v850 = vunpack.c.l.s4 1966171168
    %v851 = vunpack.c.0.s8 %v850
    %v852 = vlaneseq
    %v853 = vshrl.u32 %v852, 7
    %v854 = vsub.s32 %v851, %v853
    %v855 = vrot.slane %v388, %v854
    %v856 = vcombine.high %v855, %v855
    %v858 = vunpack.c.l.s4 1966171168
    %v859 = vunpack.c.0.s8 %v858
    %v860 = vlaneseq
    %v861 = vshrl.u32 %v860, 7
    %v862 = vsub.s32 %v859, %v861
    %v863 = vrot.slane %v855, %v862
    %v865 = vunpack.c.l.s4 1966171168
    %v866 = vunpack.c.0.s8 %v865
    %v867 = vlaneseq
    %v868 = vshrl.u32 %v867, 7
    %v869 = vsub.s32 %v866, %v868
    %v870 = vrot.slane %v856, %v869
    %v873 = vunpack.c.l.s4 1966171168
    %v874 = vunpack.c.0.s8 %v873
    %v875 = vlaneseq
    %v876 = vshrl.u32 %v875, 7
    %v877 = vsub.s32 %v874, %v876
    %v878 = vrot.slane %v459, %v877
    %v879 = vcombine.high %v878, %v878
    %v881 = vunpack.c.l.s4 1966171168
    %v882 = vunpack.c.0.s8 %v881
    %v883 = vlaneseq
    %v884 = vshrl.u32 %v883, 7
    %v885 = vsub.s32 %v882, %v884
    %v886 = vrot.slane %v878, %v885
    %v888 = vunpack.c.l.s4 1966171168
    %v889 = vunpack.c.0.s8 %v888
    %v890 = vlaneseq
    %v891 = vshrl.u32 %v890, 7
    %v892 = vsub.s32 %v889, %v891
    %v893 = vrot.slane %v879, %v892
    %v896 = vunpack.c.l.s4 1966171168
    %v897 = vunpack.c.0.s8 %v896
    %v898 = vlaneseq
    %v899 = vshrl.u32 %v898, 7
    %v900 = vsub.s32 %v897, %v899
    %v901 = vrot.slane %v530, %v900
    %v902 = vcombine.high %v901, %v901
    %v904 = vunpack.c.l.s4 1966171168
    %v905 = vunpack.c.0.s8 %v904
    %v906 = vlaneseq
    %v907 = vshrl.u32 %v906, 7
    %v908 = vsub.s32 %v905, %v907
    %v909 = vrot.slane %v901, %v908
    %v911 = vunpack.c.l.s4 1966171168
    %v912 = vunpack.c.0.s8 %v911
    %v913 = vlaneseq
    %v914 = vshrl.u32 %v913, 7
    %v915 = vsub.s32 %v912, %v914
    %v916 = vrot.slane %v902, %v915
    %v919 = vunpack.c.l.s4 1966171168
    %v920 = vunpack.c.0.s8 %v919
    %v921 = vlaneseq
    %v922 = vshrl.u32 %v921, 7
    %v923 = vsub.s32 %v920, %v922
    %v924 = vrot.slane %v601, %v923
    %v925 = vcombine.high %v924, %v924
    %v927 = vunpack.c.l.s4 1966171168
    %v928 = vunpack.c.0.s8 %v927
    %v929 = vlaneseq
    %v930 = vshrl.u32 %v929, 7
    %v931 = vsub.s32 %v928, %v930
    %v932 = vrot.slane %v924, %v931
    %v934 = vunpack.c.l.s4 1966171168
    %v935 = vunpack.c.0.s8 %v934
    %v936 = vlaneseq
    %v937 = vshrl.u32 %v936, 7
    %v938 = vsub.s32 %v935, %v937
    %v939 = vrot.slane %v925, %v938
    %v942 = vunpack.c.l.s4 1966171168
    %v943 = vunpack.c.0.s8 %v942
    %v944 = vlaneseq
    %v945 = vshrl.u32 %v944, 7
    %v946 = vsub.s32 %v943, %v945
    %v947 = vrot.slane %v672, %v946
    %v948 = vcombine.high %v947, %v947
    %v950 = vunpack.c.l.s4 1966171168
    %v951 = vunpack.c.0.s8 %v950
    %v952 = vlaneseq
    %v953 = vshrl.u32 %v952, 7
    %v954 = vsub.s32 %v951, %v953
    %v955 = vrot.slane %v947, %v954
    %v957 = vunpack.c.l.s4 1966171168
    %v958 = vunpack.c.0.s8 %v957
    %v959 = vlaneseq
    %v960 = vshrl.u32 %v959, 7
    %v961 = vsub.s32 %v958, %v960
    %v962 = vrot.slane %v948, %v961
    %v965 = vunpack.c.l.s4 1966171168
    %v966 = vunpack.c.0.s8 %v965
    %v967 = vlaneseq
    %v968 = vshrl.u32 %v967, 7
    %v969 = vsub.s32 %v966, %v968
    %v970 = vrot.slane %v743, %v969
    %v971 = vcombine.high %v970, %v970
    %v973 = vunpack.c.l.s4 1966171168
    %v974 = vunpack.c.0.s8 %v973
    %v975 = vlaneseq
    %v976 = vshrl.u32 %v975, 7
    %v977 = vsub.s32 %v974, %v976
    %v978 = vrot.slane %v970, %v977
    %v980 = vunpack.c.l.s4 1966171168
    %v981 = vunpack.c.0.s8 %v980
    %v982 = vlaneseq
    %v983 = vshrl.u32 %v982, 7
    %v984 = vsub.s32 %v981, %v983
    %v985 = vrot.slane %v971, %v984
    %v987 = vunpack.c.l.s4 1966171168
    %v988 = vunpack.c.0.s8 %v987
    %v989 = vlaneseq
    %v990 = vshrl.u32 %v989, 7
    %v991 = vsub.s32 %v988, %v990
    %v992 = vrot.slane %v814, %v991
    %v993 = vcombine.high %v992, %v992
    %v995 = vunpack.c.l.s4 1966171168
    %v996 = vunpack.c.0.s8 %v995
    %v997 = vlaneseq
    %v998 = vshrl.u32 %v997, 7
    %v999 = vsub.s32 %v996, %v998
    %v1000 = vrot.slane %v992, %v999
    %v1002 = vunpack.c.l.s4 1966171168
    %v1003 = vunpack.c.0.s8 %v1002
    %v1004 = vlaneseq
    %v1005 = vshrl.u32 %v1004, 7
    %v1006 = vsub.s32 %v1003, %v1005
    %v1007 = vrot.slane %v993, %v1006
    %v1008 = vlaneseq
    %v1009 = vshrl.u32 %v1008, 7
    %v1010 = vsub.s32 0, %v1009
    %v1011 = vrot.slane %v863, %v1010
    %v1012 = vlaneseq
    %v1013 = vshrl.u32 %v1012, 7
    %v1014 = vsub.s32 0, %v1013
    %v1015 = vrot.slane %v870, %v1014
    %v1018 = vlaneseq
    %v1019 = vshrl.u32 %v1018, 7
    %v1020 = vsub.s32 0, %v1019
    %v1021 = vrot.slane %v886, %v1020
    %v1022 = vlaneseq
    %v1023 = vshrl.u32 %v1022, 7
    %v1024 = vsub.s32 0, %v1023
    %v1025 = vrot.slane %v893, %v1024
    %v1028 = vlaneseq
    %v1029 = vshrl.u32 %v1028, 7
    %v1030 = vsub.s32 0, %v1029
    %v1031 = vrot.slane %v909, %v1030
    %v1032 = vlaneseq
    %v1033 = vshrl.u32 %v1032, 7
    %v1034 = vsub.s32 0, %v1033
    %v1035 = vrot.slane %v916, %v1034
    %v1038 = vlaneseq
    %v1039 = vshrl.u32 %v1038, 7
    %v1040 = vsub.s32 0, %v1039
    %v1041 = vrot.slane %v932, %v1040
    %v1042 = vlaneseq
    %v1043 = vshrl.u32 %v1042, 7
    %v1044 = vsub.s32 0, %v1043
    %v1045 = vrot.slane %v939, %v1044
    %v1048 = vlaneseq
    %v1049 = vshrl.u32 %v1048, 7
    %v1050 = vsub.s32 0, %v1049
    %v1051 = vrot.slane %v955, %v1050
    %v1052 = vlaneseq
    %v1053 = vshrl.u32 %v1052, 7
    %v1054 = vsub.s32 0, %v1053
    %v1055 = vrot.slane %v962, %v1054
    %v1058 = vlaneseq
    %v1059 = vshrl.u32 %v1058, 7
    %v1060 = vsub.s32 0, %v1059
    %v1061 = vrot.slane %v978, %v1060
    %v1062 = vlaneseq
    %v1063 = vshrl.u32 %v1062, 7
    %v1064 = vsub.s32 0, %v1063
    %v1065 = vrot.slane %v985, %v1064
    %v1068 = vlaneseq
    %v1069 = vshrl.u32 %v1068, 7
    %v1070 = vsub.s32 0, %v1069
    %v1071 = vrot.slane %v1000, %v1070
    %v1072 = vlaneseq
    %v1073 = vshrl.u32 %v1072, 7
    %v1074 = vsub.s32 0, %v1073
    %v1075 = vrot.slane %v1007, %v1074
    %vm1078 = vcmask 1040384
    %v1079 = vsel %vm1078, %v838, %v1011
    %v1080 = vsel %vm1078, %v845, %v1015
    %vm1081 = vcmask 1041408
    %v1082 = vsel %vm1081, %v1079, %v1021
    %v1083 = vsel %vm1081, %v1080, %v1025
    %vm1084 = vcmask 1042432
    %v1085 = vsel %vm1084, %v1082, %v1031
    %v1086 = vsel %vm1084, %v1083, %v1035
    %vm1087 = vcmask 1043456
    %v1088 = vsel %vm1087, %v1085, %v1041
    %v1089 = vsel %vm1087, %v1086, %v1045
    %vm1090 = vcmask 1044480
    %v1091 = vsel %vm1090, %v1088, %v1051
    %v1092 = vsel %vm1090, %v1089, %v1055
    %vm1093 = vcmask 1045504
    %v1094 = vsel %vm1093, %v1091, %v1061
    %v1095 = vsel %vm1093, %v1092, %v1065
    %vm1096 = vcmask 1046528
    %v1097 = vsel %vm1096, %v1094, %v1071
    %v1098 = vsel %vm1096, %v1095, %v1075
    %v1099 = vld [vmem:[%s5] sm:$0xff]
    %v1100 = vld [vmem:[%s5 + $0x8] sm:$0xff]
    %v1101 = vld [vmem:[%s5 + $0x10] sm:$0xff]
    %v1102 = vld [vmem:[%s5 + $0x18] sm:$0xff]
    %v1103 = vld [vmem:[%s5 + $0x20] sm:$0xff]
    %v1104 = vld [vmem:[%s5 + $0x28] sm:$0xff]
    %v1105 = vld [vmem:[%s5 + $0x30] sm:$0xff]
    %v1106 = vld [vmem:[%s5 + $0x38] sm:$0xff]
    %v1107 = vld [vmem:[%s5 + $0x40] sm:$0xff]
    %v1108 = vld [vmem:[%s5 + $0x48] sm:$0xff]
    %v1109 = vld [vmem:[%s5 + $0x50] sm:$0xff]
    %v1110 = vld [vmem:[%s5 + $0x58] sm:$0xff]
    %v1111 = vld [vmem:[%s5 + $0x60] sm:$0xff]
    %v1112 = vld [vmem:[%s5 + $0x68] sm:$0xff]
    %v1113 = vld [vmem:[%s5 + $0x70] sm:$0xff]
    %v1114 = vld [vmem:[%s5 + $0x78] sm:$0xff]
    %v1115 = vld [vmem:[%s6] sm:$0x1]
    %v1117 = vlaneseq
    %v1118 = vshrl.u32 %v1117, 7
    %v1119 = vsub.s32 0, %v1118
    %v1120 = vrot.slane %v1115, %v1119
    %1122 = vmatprep.subr.mxu0 0.0
    %1123 = vmatpush1.msra.mxu0 %v1114
    %1124 = vmatprep.subr.mxu0 0.0
    %1125 = vmatpush1.msra.mxu0 %v1113
    %1126 = vmatprep.subr.mxu0 0.0
    %1127 = vmatpush1.msra.mxu0 %v1112
    %1128 = vmatprep.subr.mxu0 0.0
    %1129 = vmatpush1.msra.mxu0 %v1111
    %1130 = vmatprep.subr.mxu0 0.0
    %1131 = vmatpush1.msra.mxu0 %v1110
    %1132 = vmatprep.subr.mxu0 0.0
    %1133 = vmatpush1.msra.mxu0 %v1109
    %1134 = vmatprep.subr.mxu0 0.0
    %1135 = vmatpush1.msra.mxu0 %v1108
    %1136 = vmatprep.subr.mxu0 0.0
    %1137 = vmatpush1.msra.mxu0 %v1107
    %1138 = vmatprep.subr.mxu0 0.0
    %1139 = vmatpush1.msra.mxu0 %v1106
    %1140 = vmatprep.subr.mxu0 0.0
    %1141 = vmatpush1.msra.mxu0 %v1105
    %1142 = vmatprep.subr.mxu0 0.0
    %1143 = vmatpush1.msra.mxu0 %v1104
    %1144 = vmatprep.subr.mxu0 0.0
    %1145 = vmatpush1.msra.mxu0 %v1103
    %1146 = vmatprep.subr.mxu0 0.0
    %1147 = vmatpush1.msra.mxu0 %v1102
    %1148 = vmatprep.subr.mxu0 0.0
    %1149 = vmatpush1.msra.mxu0 %v1101
    %1150 = vmatprep.subr.mxu0 0.0
    %1151 = vmatpush1.msra.mxu0 %v1100
    %1152 = vmatprep.subr.mxu0 0.0
    %1153 = vmatpush1.msra.mxu0 %v1099
    %1154 = vmatprep.subr.mxu0 0.0
    %1155 = vmatpush2.msra.mxu0 0.0
    %1156 = vmatprep.subr.mxu0 0.0
    %1157 = vmatpush2.msra.mxu0 0.0
    %1158 = vmatprep.subr.mxu0 0.0
    %1159 = vmatpush2.msra.mxu0 0.0
    %1160 = vmatprep.subr.mxu0 0.0
    %1161 = vmatpush2.msra.mxu0 0.0
    %1162 = vmatprep.subr.mxu0 0.0
    %1163 = vmatpush2.msra.mxu0 0.0
    %1164 = vmatprep.subr.mxu0 0.0
    %1165 = vmatpush2.msra.mxu0 0.0
    %1166 = vmatprep.subr.mxu0 0.0
    %1167 = vmatpush2.msra.mxu0 0.0
    %1168 = vmatprep.subr.mxu0 0.0
    %1169 = vmatpush2.msra.mxu0 0.0
    %1170 = vmatprep.subr.mxu0 0.0
    %1171 = vmatpush2.msra.mxu0 0.0
    %1172 = vmatprep.subr.mxu0 0.0
    %1173 = vmatpush2.msra.mxu0 0.0
    %1174 = vmatprep.subr.mxu0 0.0
    %1175 = vmatpush2.msra.mxu0 0.0
    %1176 = vmatprep.subr.mxu0 0.0
    %1177 = vmatpush2.msra.mxu0 0.0
    %1178 = vmatprep.subr.mxu0 0.0
    %1179 = vmatpush2.msra.mxu0 0.0
    %1180 = vmatprep.subr.mxu0 0.0
    %1181 = vmatpush2.msra.mxu0 0.0
    %1182 = vmatprep.subr.mxu0 0.0
    %1183 = vmatpush2.msra.mxu0 0.0
    %1184 = vmatprep.subr.mxu0 0.0
    %1185 = vmatpush2.msra.mxu0 0.0
    %1186 = vmatprep.mubr.f32.mxu0 0.0
    %1187 = vmatmul.mubr.f32.gmra.mxu0 %v1097
    %v1188 = vpop.f32.mrf.mxu0
    %v1189 = vadd.f32 %v1120, %v1188
    %v1190 = vpop.f32.mrf.mxu0
    %1191 = vmatprep.mubr.f32.mxu0 0.0
    %1192 = vmatmul.mubr.f32.gmra.mxu0 %v1098
    %v1193 = vpop.f32.mrf.mxu0
    %v1194 = vadd.f32 %v1120, %v1193
    %v1195 = vpop.f32.mrf.mxu0
    %1196 = vdwg.mxu0
    %1197 = vst.msk [vmem:[%s7] sm:$0xff] %vm87, %v1189
    %1198 = vst.msk [vmem:[%s7 + $0x8] sm:$0xff] %vm87, %v1194
    // Predicated region
    $region30: #{rnn_forward.1} parent=1 // pred_check
      _
    $region31: #{rnn_forward.1} parent=1 // pred_check_branch
      %1200 = sbr.rel (0) target = $region33
    $region32: #{rnn_forward.1} parent=1 // pred_region
      _
    $region33: #{rnn_forward.1} parent=1 // pred_fallthru
      _
    // Predicated region
    $region34: #{rnn_forward.1} parent=1 // pred_check
      _
    $region35: #{rnn_forward.1} parent=1 // pred_check_branch
      %1202 = sbr.rel (0) target = $region37
    $region36: #{rnn_forward.1} parent=1 // pred_region
      %s1204 = ssub.s32 64, 64
      %1205 = vsyncadd [#allocation3], %s1204
      %s1206 = sshll.u32 [#allocation2], 4
      %s1207 = int_to_ptr.vmem [resolvable:$true] %s1206
      %1212 = dma.vmem_to_hbm [thread:$0]  %s1207, 64, %s8, [#allocation3], 32, 32, 2
    $region37: #{rnn_forward.1} parent=1 // pred_fallthru
      _
    // Predicated region
    $region38: #{rnn_forward.1} parent=1 // pred_check
      _
    $region39: #{rnn_forward.1} parent=1 // pred_check_branch
      %1214 = sbr.rel (0) target = $region41
    $region40: #{rnn_forward.1} parent=1 // pred_region
      _
    $region41: #{rnn_forward.1} parent=1 // pred_fallthru
      _
    // Predicated region
    $region42: #{rnn_forward.1} parent=1 // pred_check
      _
    $region43: #{rnn_forward.1} parent=1 // pred_check_branch
      %1216 = sbr.rel (0) target = $region45
    $region44: #{rnn_forward.1} parent=1 // pred_region
      %1217 = dma.done [#allocation3], 64
    $region45: #{rnn_forward.1} parent=1 // pred_fallthru
      _
    %1218 = vsyncpa [#allocation3], 1

</llo_original>
